<compile_context>
chip_gen: v5e
topology: v5e:2x2
jax: 0.10.0
libtpu: 0.0.40
codegen_flags: <defaults>
</compile_context>

<pallas_src>
import functools

import jax
import jax.numpy as jnp
from jax.experimental import pallas as pl
from jax.experimental.pallas import tpu as pltpu


def _round_up(v, m):
    return ((v + m - 1) // m) * m


def _gsa_kernel(first_ref, last_ref,              # scalar prefetch (SMEM)
                xp_ref, batch_ref,                # streamed point tiles
                w1_ref, b1_ref, w2_ref, b2_ref,   # resident MLP params
                out_ref,                          # [Bp, H2p] running max
                *, num_graphs):
    # xp_ref:    [TN, C+3] bf16   (x ++ pos)
    # batch_ref: [TN, 1]   int32  (padded rows carry an id that never matches)
    # w1_ref:    [C+3, H1p] bf16, b1_ref: [1, H1p] f32
    # w2_ref:    [H1p, H2p] bf16, b2_ref: [1, H2p] f32
    # out_ref:   [Bp, H2p]  f32   resident running-max accumulator
    t = pl.program_id(0)

    # ReLU output >= 0, so 0 is a valid identity for the running max (and the
    # value returned for empty graphs).
    @pl.when(t == 0)
    def _init():
        out_ref[...] = jnp.zeros_like(out_ref)

    # ---- MLP layer 1: fused [x ++ pos] @ W1 (bf16 MXU operands, f32 acc) ----
    h1 = jnp.dot(xp_ref[...], w1_ref[...], preferred_element_type=jnp.float32)
    h1 = jnp.maximum(h1 + b1_ref[...], 0.0)                      # [TN, H1p]

    # ---- MLP layer 2 ----
    h2 = jnp.dot(h1.astype(w2_ref.dtype), w2_ref[...],
                 preferred_element_type=jnp.float32)
    h2 = jnp.maximum(h2 + b2_ref[...], 0.0)                      # [TN, H2p] >= 0

    # ---- segment max: gated per-graph masked sublane reduce, accumulated
    # directly into the resident output (no parts list / concatenate) ----
    bidx = batch_ref[...]                                        # [TN, 1] int32
    first = first_ref[t]
    last = last_ref[t]
    for g in range(num_graphs):                                  # unrolled, runtime-gated
        @pl.when((first <= g) & (g <= last))
        def _acc(g=g):
            masked = jnp.where(bidx == g, h2, 0.0)               # [TN, H2p]
            row = jnp.max(masked, axis=0, keepdims=True)         # [1, H2p]
            out_ref[pl.ds(g, 1), :] = jnp.maximum(out_ref[pl.ds(g, 1), :], row)


def global_sa_module(x, pos, batch, params, num_graphs, *, tile_n=2048):
    """JAX wrapper mirroring GlobalSAModule.forward.

    x:     [N, C]  float point features
    pos:   [N, 3]  float point coordinates
    batch: [N]     int graph assignment in [0, num_graphs)
    params: (w1 [C+3,H1], b1 [H1], w2 [H1,H2], b2 [H2])
    Returns (out [num_graphs,H2], pos_out [num_graphs,3], batch_out [num_graphs]).
    """
    w1, b1, w2, b2 = params
    N, C = x.shape
    K = C + 3
    H1, H2 = w1.shape[1], w2.shape[1]

    # Lane-dense padded widths (zero-padded weights => exact no-op columns).
    H1p = _round_up(H1, 128)
    H2p = _round_up(H2, 128)
    Bp = _round_up(max(num_graphs, 1), 8)          # full-sublane accumulator rows

    w1p = jnp.pad(w1.astype(jnp.bfloat16), ((0, 0), (0, H1p - H1)))
    b1p = jnp.pad(b1.astype(jnp.float32), (0, H1p - H1)).reshape(1, H1p)
    w2p = jnp.pad(w2.astype(jnp.bfloat16), ((0, H1p - H1), (0, H2p - H2)))
    b2p = jnp.pad(b2.astype(jnp.float32), (0, H2p - H2)).reshape(1, H2p)

    # ---- tiling over N: large tiles => few grid steps (was step-overhead bound
    # at TN=512).  TN=2048 keeps the f32 [TN,H1p]/[TN,H2p] intermediates well
    # inside v7x's 64 MiB VMEM even at production widths; sweep upward on
    # v5e/v6e (128 MiB).
    TN = min(tile_n, max(8, _round_up(N, 8)))
    num_tiles = pl.cdiv(N, TN)
    N_pad = num_tiles * TN
    pad_n = N_pad - N

    xp = jnp.concatenate([x.astype(jnp.float32), pos.astype(jnp.float32)], axis=1)
    xp = jnp.pad(xp, ((0, pad_n), (0, 0))).astype(jnp.bfloat16)       # [N_pad, K]
    batch_i = batch.astype(jnp.int32)
    # padded rows get graph id == Bp -> never match any real graph id
    batch_p = jnp.pad(batch_i, (0, pad_n), constant_values=Bp).reshape(N_pad, 1)

    # Per-tile [first, last] graph-id ranges, scalar-prefetched into SMEM (1-D
    # arrays to avoid 2-D SMEM padding blowup).  Tight when `batch` is sorted;
    # otherwise just a covering range (correct, less gating benefit).
    batch_rng = jnp.pad(batch_i, (0, pad_n), mode="edge").reshape(num_tiles, TN)
    tile_first = jnp.min(batch_rng, axis=1).astype(jnp.int32)
    tile_last = jnp.max(batch_rng, axis=1).astype(jnp.int32)

    flops = 2 * N_pad * (K * H1p + H1p * H2p)
    bytes_accessed = (2 * N_pad * K + 4 * N_pad
                      + 2 * (K * H1p + H1p * H2p) + 4 * (H1p + H2p)
                      + 4 * Bp * H2p)

    grid_spec = pltpu.PrefetchScalarGridSpec(
        num_scalar_prefetch=2,
        grid=(num_tiles,),
        in_specs=[
            pl.BlockSpec((TN, K), lambda i, f, l: (i, 0)),      # x ++ pos tile
            pl.BlockSpec((TN, 1), lambda i, f, l: (i, 0)),      # batch ids tile
            pl.BlockSpec((K, H1p), lambda i, f, l: (0, 0)),     # W1 (resident)
            pl.BlockSpec((1, H1p), lambda i, f, l: (0, 0)),     # b1
            pl.BlockSpec((H1p, H2p), lambda i, f, l: (0, 0)),   # W2 (resident)
            pl.BlockSpec((1, H2p), lambda i, f, l: (0, 0)),     # b2
        ],
        out_specs=pl.BlockSpec((Bp, H2p), lambda i, f, l: (0, 0)),
    )

    out_padded = pl.pallas_call(
        functools.partial(_gsa_kernel, num_graphs=num_graphs),
        out_shape=jax.ShapeDtypeStruct((Bp, H2p), jnp.float32),
        grid_spec=grid_spec,
        compiler_params=pltpu.CompilerParams(
            dimension_semantics=("arbitrary",),     # reduction axis (resident out)
            vmem_limit_bytes=48 * 1024 * 1024,      # conservative for v7x (64 MiB)
        ),
        cost_estimate=pl.CostEstimate(
            flops=flops, transcendentals=0, bytes_accessed=bytes_accessed),
    )(tile_first, tile_last, xp, batch_p, w1p, b1p, w2p, b2p)

    out = out_padded[:num_graphs, :H2]
    pos_out = jnp.zeros((num_graphs, 3), dtype=pos.dtype)
    batch_out = jnp.arange(num_graphs, dtype=batch.dtype)
    return out, pos_out, batch_out


def make_params(key, in_dim, h1, h2):
    """Deterministic synthetic MLP parameters (Linear+ReLU, Linear+ReLU)."""
    k1, k2, k3, k4 = jax.random.split(key, 4)
    w1 = jax.random.normal(k1, (in_dim, h1), jnp.float32) * (1.0 / jnp.sqrt(in_dim))
    b1 = jax.random.normal(k2, (h1,), jnp.float32) * 0.01
    w2 = jax.random.normal(k3, (h1, h2), jnp.float32) * (1.0 / jnp.sqrt(h1))
    b2 = jax.random.normal(k4, (h2,), jnp.float32) * 0.01
    return (w1, b1, w2, b2)


if __name__ == "__main__":
    # Small shapes: 2 graphs, 8 points each, 4 input features (+3 pos), MLP 7->32->64
    N, C, B = 16, 4, 2
    H1, H2 = 32, 64

    key = jax.random.PRNGKey(0)
    kx, kp, kw = jax.random.split(key, 3)
    x = jax.random.normal(kx, (N, C), jnp.float32)
    pos = jax.random.normal(kp, (N, 3), jnp.float32)
    batch = jnp.repeat(jnp.arange(B, dtype=jnp.int32), N // B)   # [0]*8 + [1]*8
    params = make_params(kw, C + 3, H1, H2)

    run = functools.partial(global_sa_module, params=params, num_graphs=B)
    out_x, out_pos, out_batch = run(x, pos, batch)
    jax.block_until_ready((out_x, out_pos, out_batch))

    # Plain-JAX reference (f32).  Kernel uses bf16 MXU operands (f32 accumulate)
    # per the perf review, so tolerance is loosened accordingly.
    w1, b1, w2, b2 = params
    h = jnp.maximum(jnp.concatenate([x, pos], axis=1) @ w1 + b1, 0.0)
    h = jnp.maximum(h @ w2 + b2, 0.0)
    ref = jnp.stack([jnp.max(jnp.where((batch == g)[:, None], h, -jnp.inf), axis=0)
                     for g in range(B)])
    assert out_x.shape == (B, H2), f"bad shape {out_x.shape}"
    assert jnp.allclose(out_x, ref, atol=5e-2, rtol=5e-2), "mismatch vs reference"
    assert out_pos.shape == (B, 3) and bool(jnp.all(out_pos == 0))
    assert jnp.array_equal(out_batch, jnp.arange(B, dtype=jnp.int32))

    print("KERNEL_OK")
</pallas_src>

<mosaic_0001>
module attributes {stable_mosaic.version = 11 : i64} {
  func.func @_gsa_kernel(%arg0: i32, %arg1: memref<1xi32, #tpu.memory_space<smem>>, %arg2: memref<1xi32, #tpu.memory_space<smem>>, %arg3: memref<16x7xbf16, #tpu.memory_space<vmem>>, %arg4: memref<16x1xi32, #tpu.memory_space<vmem>>, %arg5: memref<7x128xbf16, #tpu.memory_space<vmem>>, %arg6: memref<1x128xf32, #tpu.memory_space<vmem>>, %arg7: memref<128x128xbf16, #tpu.memory_space<vmem>>, %arg8: memref<1x128xf32, #tpu.memory_space<vmem>>, %arg9: memref<8x128xf32, #tpu.memory_space<vmem>>) attributes {dimension_semantics = [#tpu.dimension_semantics<arbitrary>], iteration_bounds = array<i64: 1>, scalar_prefetch = 2 : i64, scratch_operands = 0 : i64, tpu.core_type = #tpu.core_type<tc>, window_params = [{transform_indices = @transform_0, window_bounds = array<i64: 16, 7>}, {transform_indices = @transform_1, window_bounds = array<i64: 16, 1>}, {pipeline_mode = #tpu.pipeline_mode<synchronous>, transform_indices = @transform_2, window_bounds = array<i64: 7, 128>}, {pipeline_mode = #tpu.pipeline_mode<synchronous>, transform_indices = @transform_3, window_bounds = array<i64: 1, 128>}, {pipeline_mode = #tpu.pipeline_mode<synchronous>, transform_indices = @transform_4, window_bounds = array<i64: 128, 128>}, {pipeline_mode = #tpu.pipeline_mode<synchronous>, transform_indices = @transform_5, window_bounds = array<i64: 1, 128>}, {pipeline_mode = #tpu.pipeline_mode<synchronous>, transform_indices = @transform_6, window_bounds = array<i64: 8, 128>}]} {
    %c0_i32 = arith.constant 0 : i32
    %0 = arith.cmpi eq, %arg0, %c0_i32 : i32
    %1 = arith.extui %0 : i1 to i32
    %c0_i32_0 = arith.constant 0 : i32
    %2 = arith.cmpi ne, %1, %c0_i32_0 : i32
    scf.if %2 {
      %cst_20 = arith.constant 0.000000e+00 : f32
      %34 = vector.broadcast %cst_20 : f32 to vector<8x128xf32>
      %c0_21 = arith.constant 0 : index
      %c0_22 = arith.constant 0 : index
      %35 = vector.load %arg9[%c0_21, %c0_22] : memref<8x128xf32, #tpu.memory_space<vmem>>, vector<8x128xf32>
      tpu.vector_store %arg9[%c0_21, %c0_22], %34 {strides = array<i32>} : memref<8x128xf32, #tpu.memory_space<vmem>>, vector<8x128xf32>,
    } else {
    }
    %c0 = arith.constant 0 : index
    %c0_1 = arith.constant 0 : index
    %3 = vector.load %arg3[%c0, %c0_1] : memref<16x7xbf16, #tpu.memory_space<vmem>>, vector<16x7xbf16>
    %c0_2 = arith.constant 0 : index
    %c0_3 = arith.constant 0 : index
    %4 = vector.load %arg5[%c0_2, %c0_3] : memref<7x128xbf16, #tpu.memory_space<vmem>>, vector<7x128xbf16>
    %cst = arith.constant dense<0.000000e+00> : vector<16x128xf32>
    %5 = tpu.matmul %3, %4, %cst {dimension_numbers = #tpu.dot_dimension_numbers<[1], [0], [0], [1], [0, 0, 1, 1], [], []>} : vector<16x7xbf16>, vector<7x128xbf16>, vector<16x128xf32> -> vector<16x128xf32>
    %c0_4 = arith.constant 0 : index
    %c0_5 = arith.constant 0 : index
    %6 = vector.load %arg6[%c0_4, %c0_5] : memref<1x128xf32, #tpu.memory_space<vmem>>, vector<1x128xf32>
    %7 = vector.broadcast %6 : vector<1x128xf32> to vector<16x128xf32>
    %8 = arith.addf %5, %7 : vector<16x128xf32>
    %cst_6 = arith.constant 0.000000e+00 : f32
    %9 = vector.broadcast %cst_6 : f32 to vector<16x128xf32>
    %10 = arith.maximumf %8, %9 : vector<16x128xf32>
    %11 = arith.truncf %10 : vector<16x128xf32> to vector<16x128xbf16>
    %c0_7 = arith.constant 0 : index
    %c0_8 = arith.constant 0 : index
    %12 = vector.load %arg7[%c0_7, %c0_8] : memref<128x128xbf16, #tpu.memory_space<vmem>>, vector<128x128xbf16>
    %cst_9 = arith.constant dense<0.000000e+00> : vector<16x128xf32>
    %13 = tpu.matmul %11, %12, %cst_9 {dimension_numbers = #tpu.dot_dimension_numbers<[1], [0], [0], [1], [0, 0, 1, 1], [], []>} : vector<16x128xbf16>, vector<128x128xbf16>, vector<16x128xf32> -> vector<16x128xf32>
    %c0_10 = arith.constant 0 : index
    %c0_11 = arith.constant 0 : index
    %14 = vector.load %arg8[%c0_10, %c0_11] : memref<1x128xf32, #tpu.memory_space<vmem>>, vector<1x128xf32>
    %15 = vector.broadcast %14 : vector<1x128xf32> to vector<16x128xf32>
    %16 = arith.addf %13, %15 : vector<16x128xf32>
    %cst_12 = arith.constant 0.000000e+00 : f32
    %17 = vector.broadcast %cst_12 : f32 to vector<16x128xf32>
    %18 = arith.maximumf %16, %17 : vector<16x128xf32>
    %c0_13 = arith.constant 0 : index
    %c0_14 = arith.constant 0 : index
    %19 = vector.load %arg4[%c0_13, %c0_14] : memref<16x1xi32, #tpu.memory_space<vmem>>, vector<16x1xi32>
    %20 = arith.index_cast %arg0 : i32 to index
    %21 = memref.load %arg1[%20] : memref<1xi32, #tpu.memory_space<smem>>
    %22 = arith.index_cast %arg0 : i32 to index
    %23 = memref.load %arg2[%22] : memref<1xi32, #tpu.memory_space<smem>>
    %c0_i32_15 = arith.constant 0 : i32
    %24 = arith.cmpi sle, %21, %c0_i32_15 : i32
    %c0_i32_16 = arith.constant 0 : i32
    %25 = arith.cmpi sge, %23, %c0_i32_16 : i32
    %26 = arith.andi %24, %25 : i1
    %27 = arith.extui %26 : i1 to i32
    %c0_i32_17 = arith.constant 0 : i32
    %28 = arith.cmpi ne, %27, %c0_i32_17 : i32
    scf.if %28 {
      %c0_i32_20 = arith.constant 0 : i32
      %34 = vector.broadcast %c0_i32_20 : i32 to vector<16x1xi32>
      %35 = arith.cmpi eq, %19, %34 : vector<16x1xi32>
      %cst_21 = arith.constant 0.000000e+00 : f32
      %36 = vector.shape_cast %35 : vector<16x1xi1> to vector<16x1xi1>
      %37 = vector.broadcast %36 : vector<16x1xi1> to vector<16x128xi1>
      %38 = vector.broadcast %cst_21 : f32 to vector<16x128xf32>
      %39 = arith.select %37, %18, %38 : vector<16x128xi1>, vector<16x128xf32>
      %cst_22 = arith.constant dense<0xFF800000> : vector<128xf32>
      %40 = vector.multi_reduction <maximumf>, %39, %cst_22 [0] : vector<16x128xf32> to vector<128xf32>
      %41 = vector.shape_cast %40 : vector<128xf32> to vector<1x128xf32>
      %c0_23 = arith.constant 0 : index
      %c0_24 = arith.constant 0 : index
      %42 = vector.load %arg9[%c0_23, %c0_24] : memref<8x128xf32, #tpu.memory_space<vmem>>, vector<1x128xf32>
      %43 = arith.maximumf %42, %41 : vector<1x128xf32>
      %c0_25 = arith.constant 0 : index
      %c0_26 = arith.constant 0 : index
      %44 = vector.load %arg9[%c0_25, %c0_26] : memref<8x128xf32, #tpu.memory_space<vmem>>, vector<1x128xf32>
      tpu.vector_store %arg9[%c0_25, %c0_26], %43 {strides = array<i32>} : memref<8x128xf32, #tpu.memory_space<vmem>>, vector<1x128xf32>,
    } else {
    }
    %c1_i32 = arith.constant 1 : i32
    %29 = arith.cmpi sle, %21, %c1_i32 : i32
    %c1_i32_18 = arith.constant 1 : i32
    %30 = arith.cmpi sge, %23, %c1_i32_18 : i32
    %31 = arith.andi %29, %30 : i1
    %32 = arith.extui %31 : i1 to i32
    %c0_i32_19 = arith.constant 0 : i32
    %33 = arith.cmpi ne, %32, %c0_i32_19 : i32
    scf.if %33 {
      %c1_i32_20 = arith.constant 1 : i32
      %34 = vector.broadcast %c1_i32_20 : i32 to vector<16x1xi32>
      %35 = arith.cmpi eq, %19, %34 : vector<16x1xi32>
      %cst_21 = arith.constant 0.000000e+00 : f32
      %36 = vector.shape_cast %35 : vector<16x1xi1> to vector<16x1xi1>
      %37 = vector.broadcast %36 : vector<16x1xi1> to vector<16x128xi1>
      %38 = vector.broadcast %cst_21 : f32 to vector<16x128xf32>
      %39 = arith.select %37, %18, %38 : vector<16x128xi1>, vector<16x128xf32>
      %cst_22 = arith.constant dense<0xFF800000> : vector<128xf32>
      %40 = vector.multi_reduction <maximumf>, %39, %cst_22 [0] : vector<16x128xf32> to vector<128xf32>
      %41 = vector.shape_cast %40 : vector<128xf32> to vector<1x128xf32>
      %c1 = arith.constant 1 : index
      %c0_23 = arith.constant 0 : index
      %42 = vector.load %arg9[%c1, %c0_23] : memref<8x128xf32, #tpu.memory_space<vmem>>, vector<1x128xf32>
      %43 = arith.maximumf %42, %41 : vector<1x128xf32>
      %c1_24 = arith.constant 1 : index
      %c0_25 = arith.constant 0 : index
      %44 = vector.load %arg9[%c1_24, %c0_25] : memref<8x128xf32, #tpu.memory_space<vmem>>, vector<1x128xf32>
      tpu.vector_store %arg9[%c1_24, %c0_25], %43 {strides = array<i32>} : memref<8x128xf32, #tpu.memory_space<vmem>>, vector<1x128xf32>,
    } else {
    }
    return
  }
  func.func @transform_0(%arg0: i32, %arg1: memref<1xi32, #tpu.memory_space<smem>>, %arg2: memref<1xi32, #tpu.memory_space<smem>>) -> (i32, i32) {
    %c0_i32 = arith.constant 0 : i32
    %c0_i32_0 = arith.constant 0 : i32
    return %arg0, %c0_i32 : i32, i32
  }
  func.func @transform_1(%arg0: i32, %arg1: memref<1xi32, #tpu.memory_space<smem>>, %arg2: memref<1xi32, #tpu.memory_space<smem>>) -> (i32, i32) {
    %c0_i32 = arith.constant 0 : i32
    %c0_i32_0 = arith.constant 0 : i32
    return %arg0, %c0_i32 : i32, i32
  }
  func.func @transform_2(%arg0: i32, %arg1: memref<1xi32, #tpu.memory_space<smem>>, %arg2: memref<1xi32, #tpu.memory_space<smem>>) -> (i32, i32) {
    %c0_i32 = arith.constant 0 : i32
    %c0_i32_0 = arith.constant 0 : i32
    %c0_i32_1 = arith.constant 0 : i32
    return %c0_i32, %c0_i32_0 : i32, i32
  }
  func.func @transform_3(%arg0: i32, %arg1: memref<1xi32, #tpu.memory_space<smem>>, %arg2: memref<1xi32, #tpu.memory_space<smem>>) -> (i32, i32) {
    %c0_i32 = arith.constant 0 : i32
    %c0_i32_0 = arith.constant 0 : i32
    %c0_i32_1 = arith.constant 0 : i32
    return %c0_i32, %c0_i32_0 : i32, i32
  }
  func.func @transform_4(%arg0: i32, %arg1: memref<1xi32, #tpu.memory_space<smem>>, %arg2: memref<1xi32, #tpu.memory_space<smem>>) -> (i32, i32) {
    %c0_i32 = arith.constant 0 : i32
    %c0_i32_0 = arith.constant 0 : i32
    %c0_i32_1 = arith.constant 0 : i32
    return %c0_i32, %c0_i32_0 : i32, i32
  }
  func.func @transform_5(%arg0: i32, %arg1: memref<1xi32, #tpu.memory_space<smem>>, %arg2: memref<1xi32, #tpu.memory_space<smem>>) -> (i32, i32) {
    %c0_i32 = arith.constant 0 : i32
    %c0_i32_0 = arith.constant 0 : i32
    %c0_i32_1 = arith.constant 0 : i32
    return %c0_i32, %c0_i32_0 : i32, i32
  }
  func.func @transform_6(%arg0: i32, %arg1: memref<1xi32, #tpu.memory_space<smem>>, %arg2: memref<1xi32, #tpu.memory_space<smem>>) -> (i32, i32) {
    %c0_i32 = arith.constant 0 : i32
    %c0_i32_0 = arith.constant 0 : i32
    %c0_i32_1 = arith.constant 0 : i32
    return %c0_i32, %c0_i32_0 : i32, i32
  }
}

</mosaic_0001>

<llo_original>
// kernel: tpu_custom_call.1
$region0: #{tpu_custom_call.1}
  #allocation0 [shape = 'u32[]', space=smem, size = 0x4, offset = 0x4, fixed_abs, tag = 'smem constant byte address 0x4 - core index']
  #allocation1 [shape = 'u32[72,128]{1,0:T(1,128)}', space=vmem, size = 0x9000, scoped, tag = 'internal scratch']
  #allocation2 [shape = 's32[1]{0}', space=sflag, size = 0x4, scoped, tag = 'scoped memory for tpu_custom_call.1']
  #allocation3 [shape = 's32[1]{0:T(128)S(6)}', space=smem, size = 0x200, scoped, tag = 'prefetched SMEM operand 0']
  #allocation4 [shape = 's32[1]{0:T(128)S(6)}', space=smem, size = 0x200, scoped, tag = 'prefetched SMEM operand 1']
  %s0 = inlined_call_operand.<no memory space> [shape: s32[1], index: 0, kind: input, shape index: {}]
  %s1 = inlined_call_operand.<no memory space> [shape: s32[1], index: 1, kind: input, shape index: {}]
  %s2 = inlined_call_operand.vmem [shape: bf16[16,7], index: 2, kind: input, shape index: {}]
  %s3 = inlined_call_operand.vmem [shape: s32[16,1], index: 3, kind: input, shape index: {}]
  %s4 = inlined_call_operand.vmem [shape: bf16[7,128], index: 4, kind: input, shape index: {}]
  %s5 = inlined_call_operand.vmem [shape: f32[1,128], index: 5, kind: input, shape index: {}]
  %s6 = inlined_call_operand.hbm [shape: bf16[128,128], index: 6, kind: input, shape index: {}]
  %s7 = inlined_call_operand.vmem [shape: f32[1,128], index: 7, kind: input, shape index: {}]
  %s8 = inlined_call_operand.hbm [shape: f32[8,128], index: 8, kind: output, shape index: {}]
  %s9 = sld [smem:[#allocation0]]
  $region50: #{tpu_custom_call.1} parent=0
    _
  %s11 = ssub.s32 1, %s9
  %s12 = scalar_select 0, %s11, %s9
  %13 = sst [smem:[#allocation3]] %s0
  %14 = sst [smem:[#allocation4]] %s1
  $region1: #{tpu_custom_call.1} parent=0
    #allocation5 [shape = 'u8[32768]{0}', space=vmem, size = 0x8000, scoped, tag = 'input window, operand 6, single buffered']
    #allocation6 [shape = 's32[1]{0}', space=sflag, size = 0x4, scoped, tag = 'scoped memory for tpu_custom_call.1']
    #allocation7 [shape = 's32[1]{0}', space=sflag, size = 0x4, scoped, tag = 'scoped memory for tpu_custom_call.1']
    #allocation8 [shape = 'u8[4096]{0}', space=vmem, size = 0x1000, scoped, tag = 'output window, operand 0, single buffered']
    %15 = vsyncpa [#allocation6], 0
    %16 = vsyncpa [#allocation7], 0
    // Predicated region
    $region2: #{tpu_custom_call.1} parent=1 // pred_check
      _
    $region3: #{tpu_custom_call.1} parent=1 // pred_check_branch
      %18 = sbr.rel (0) target = $region5
    $region4: #{tpu_custom_call.1} parent=1 // pred_region
      _
    $region5: #{tpu_custom_call.1} parent=1 // pred_fallthru
      _
    // Predicated region
    $region6: #{tpu_custom_call.1} parent=1 // pred_check
      _
    $region7: #{tpu_custom_call.1} parent=1 // pred_check_branch
      %20 = sbr.rel (0) target = $region9
    $region8: #{tpu_custom_call.1} parent=1 // pred_region
      _
    $region9: #{tpu_custom_call.1} parent=1 // pred_fallthru
      _
    // Predicated region
    $region10: #{tpu_custom_call.1} parent=1 // pred_check
      _
    $region11: #{tpu_custom_call.1} parent=1 // pred_check_branch
      %22 = sbr.rel (0) target = $region13
    $region12: #{tpu_custom_call.1} parent=1 // pred_region
      _
    $region13: #{tpu_custom_call.1} parent=1 // pred_fallthru
      _
    // Predicated region
    $region14: #{tpu_custom_call.1} parent=1 // pred_check
      _
    $region15: #{tpu_custom_call.1} parent=1 // pred_check_branch
      %24 = sbr.rel (0) target = $region17
    $region16: #{tpu_custom_call.1} parent=1 // pred_region
      _
    $region17: #{tpu_custom_call.1} parent=1 // pred_fallthru
      _
    // Predicated region
    $region18: #{tpu_custom_call.1} parent=1 // pred_check
      _
    $region19: #{tpu_custom_call.1} parent=1 // pred_check_branch
      %26 = sbr.rel (0) target = $region21
    $region20: #{tpu_custom_call.1} parent=1 // pred_region
      %28 = vsyncadd [#allocation6], 0
      %s29 = sshll.u32 %s6, 4
      %s30 = int_to_ptr.hbm [resolvable:$true] %s29
      %s31 = sshll.u32 [#allocation5], 4
      %s32 = int_to_ptr.vmem [resolvable:$true] %s31
      %37 = dma.hbm_to_vmem [thread:$0]  %s30, 1024, %s32, [#allocation6], 64, 64, 4
    $region21: #{tpu_custom_call.1} parent=1 // pred_fallthru
      _
    // Predicated region
    $region22: #{tpu_custom_call.1} parent=1 // pred_check
      _
    $region23: #{tpu_custom_call.1} parent=1 // pred_check_branch
      %39 = sbr.rel (0) target = $region25
    $region24: #{tpu_custom_call.1} parent=1 // pred_region
      _
    $region25: #{tpu_custom_call.1} parent=1 // pred_fallthru
      _
    // Predicated region
    $region26: #{tpu_custom_call.1} parent=1 // pred_check
      _
    $region27: #{tpu_custom_call.1} parent=1 // pred_check_branch
      %41 = sbr.rel (0) target = $region29
    $region28: #{tpu_custom_call.1} parent=1 // pred_region
      %43 = dma.done [#allocation6], 1024
    $region29: #{tpu_custom_call.1} parent=1 // pred_fallthru
      _
    %p45 = scmp.eq.s32.totalorder 0, 0
    // Predicated region
    $region30: #{tpu_custom_call.1} parent=1 // pred_check
      %p46 = pneg %p45
    $region31: #{tpu_custom_call.1} parent=1 // pred_check_branch
      %48 = sbr.rel (%p46) target = $region33
    $region32: #{tpu_custom_call.1} parent=1 // pred_region
      %49 = vst [vmem:[#allocation8] sm:$0xff] 0.0
    $region33: #{tpu_custom_call.1} parent=1 // pred_fallthru
      _
    %v50 = vld [vmem:[%s2] sm:$0xf]
    %v51 = vld [vmem:[%s2 + $0x4] sm:$0xf]
    %v52 = vld [vmem:[%s4] sm:$0xf]
    %v53 = vld [vmem:[%s5] sm:$0x1]
    %v55 = vperm.slane %v53, 0
    %v59 = vunpack.c.l.b16 %v50
    %v60 = vunpack.c.l.b16 %v51
    %v61 = vpack.c.b16 %v60, %v59
    %vm62 = vcmask 56320
    %v64 = vsel %vm62, %v61, 0
    %vm66 = vcmask 1042432
    %vm67 = vcmask 1043456
    %v68 = vsel %vm66, 4294967295, 65535
    %v69 = vsel %vm67, %v68, 0
    %v71 = vand.u32 %v52, %v69
    %73 = vmatpush.bf16.msra.mxu0 0
    %74 = vmatpush.bf16.msra.mxu0 0
    %75 = vmatpush.bf16.msra.mxu0 0
    %76 = vmatpush.bf16.msra.mxu0 0
    %77 = vmatpush.bf16.msra.mxu0 0
    %78 = vmatpush.bf16.msra.mxu0 0
    %79 = vmatpush.bf16.msra.mxu0 0
    %80 = vmatpush.bf16.msra.mxu0 %v71
    %81 = vmatmul.bf16.gmra.mxu0 %v64
    %v82 = vpop.f32.mrf.mxu0
    %v83 = vadd.f32 %v55, %v82
    %v84 = vpop.f32.mrf.mxu0
    %v85 = vadd.f32 %v55, %v84
    %86 = vdwg.mxu0
    %v87 = vmax.f32 %v83, 0.0
    %v88 = vmax.f32 %v85, 0.0
    %v89 = vpack.c.bf16 %v88, %v87
    %v90 = vld [vmem:[#allocation5] sm:$0xf]
    %v91 = vld [vmem:[#allocation5 + $0x4] sm:$0xf]
    %v92 = vld [vmem:[#allocation5 + $0x8] sm:$0xf]
    %v93 = vld [vmem:[#allocation5 + $0xc] sm:$0xf]
    %v94 = vld [vmem:[#allocation5 + $0x10] sm:$0xf]
    %v95 = vld [vmem:[#allocation5 + $0x14] sm:$0xf]
    %v96 = vld [vmem:[#allocation5 + $0x18] sm:$0xf]
    %v97 = vld [vmem:[#allocation5 + $0x1c] sm:$0xf]
    %v98 = vld [vmem:[#allocation5 + $0x20] sm:$0xf]
    %v99 = vld [vmem:[#allocation5 + $0x24] sm:$0xf]
    %v100 = vld [vmem:[#allocation5 + $0x28] sm:$0xf]
    %v101 = vld [vmem:[#allocation5 + $0x2c] sm:$0xf]
    %v102 = vld [vmem:[#allocation5 + $0x30] sm:$0xf]
    %v103 = vld [vmem:[#allocation5 + $0x34] sm:$0xf]
    %v104 = vld [vmem:[#allocation5 + $0x38] sm:$0xf]
    %v105 = vld [vmem:[#allocation5 + $0x3c] sm:$0xf]
    %v106 = vld [vmem:[%s7] sm:$0x1]
    %v108 = vperm.slane %v106, 0
    %v126 = vunpack.c.l.b16 %v90
    %v127 = vunpack.c.l.b16 %v91
    %v128 = vunpack.c.l.b16 %v92
    %v129 = vunpack.c.l.b16 %v93
    %v130 = vunpack.c.l.b16 %v94
    %v131 = vunpack.c.l.b16 %v95
    %v132 = vunpack.c.l.b16 %v96
    %v133 = vunpack.c.l.b16 %v97
    %v134 = vunpack.c.l.b16 %v98
    %v135 = vunpack.c.l.b16 %v99
    %v136 = vunpack.c.l.b16 %v100
    %v137 = vunpack.c.l.b16 %v101
    %v138 = vunpack.c.l.b16 %v102
    %v139 = vunpack.c.l.b16 %v103
    %v140 = vunpack.c.l.b16 %v104
    %v141 = vunpack.c.l.b16 %v105
    %v142 = vpack.c.b16 %v127, %v126
    %v143 = vpack.c.b16 %v129, %v128
    %v144 = vpack.c.b16 %v131, %v130
    %v145 = vpack.c.b16 %v133, %v132
    %v146 = vpack.c.b16 %v135, %v134
    %v147 = vpack.c.b16 %v137, %v136
    %v148 = vpack.c.b16 %v139, %v138
    %v149 = vpack.c.b16 %v141, %v140
    %158 = vmatpush.bf16.msra.mxu0 %v149
    %159 = vmatpush.bf16.msra.mxu0 %v148
    %160 = vmatpush.bf16.msra.mxu0 %v147
    %161 = vmatpush.bf16.msra.mxu0 %v146
    %162 = vmatpush.bf16.msra.mxu0 %v145
    %163 = vmatpush.bf16.msra.mxu0 %v144
    %164 = vmatpush.bf16.msra.mxu0 %v143
    %165 = vmatpush.bf16.msra.mxu0 %v142
    %166 = vmatmul.bf16.gmra.mxu0 %v89
    %v167 = vpop.f32.mrf.mxu0
    %v168 = vadd.f32 %v108, %v167
    %v169 = vpop.f32.mrf.mxu0
    %v170 = vadd.f32 %v108, %v169
    %171 = vdwg.mxu0
    %v172 = vmax.f32 %v168, 0.0
    %v173 = vmax.f32 %v170, 0.0
    %v174 = vld [vmem:[%s3] sm:$0xff]
    %v175 = vld [vmem:[%s3 + $0x8] sm:$0xff]
    %s176 = sld [smem:[#allocation3]]
    %s177 = sld [smem:[#allocation4]]
    %p178 = scmp.le.s32.totalorder %s176, 0
    %p179 = scmp.ge.s32.totalorder %s177, 0
    %p180 = pnand %p178, %p179
    %p181 = pneg %p180
    // Predicated region
    $region34: #{tpu_custom_call.1} parent=1 // pred_check
      _
    $region35: #{tpu_custom_call.1} parent=1 // pred_check_branch
      %183 = sbr.rel (%p180) target = $region37
    $region36: #{tpu_custom_call.1} parent=1 // pred_region
      %vm184 = vcmp.eq.s32.totalorder %v174, 0
      %vm185 = vcmp.eq.s32.totalorder %v175, 0
      %v186 = vsel %vm184, 1, 0
      %v187 = vsel %vm185, 1, 0
      %188 = vset.pattern.permute.xlu0 0
      %189 = vperm.xlu0 %188, %v186
      %v190 = vpop.permute.xlu0 %189
      %191 = vset.pattern.permute.xlu0 0
      %192 = vperm.xlu0 %191, %v187
      %v193 = vpop.permute.xlu0 %192
      %vm194 = vcmp.eq.s32.totalorder %v190, 1
      %vm195 = vcmp.eq.s32.totalorder %v193, 1
      %v196 = vsel %vm194, %v172, 0.0
      %v197 = vsel %vm195, %v173, 0.0
      %v198 = vmax.f32 %v196, %v197
      %v199 = vrot.slane %v198, 4
      %v200 = vmax.f32 %v198, %v199
      %v201 = vrot.slane %v200, 2
      %v202 = vmax.f32 %v200, %v201
      %v203 = vrot.slane %v202, 1
      %v204 = vmax.f32 %v202, %v203
      %v205 = vld [vmem:[#allocation8] sm:$0x1]
      %v206 = vmax.f32 %v205, %v204
      %207 = vst [vmem:[#allocation8] sm:$0x1] %v206
    $region37: #{tpu_custom_call.1} parent=1 // pred_fallthru
      _
    %p208 = scmp.le.s32.totalorder %s176, 1
    %p209 = scmp.ge.s32.totalorder %s177, 1
    %p210 = pnand %p208, %p209
    %p211 = pneg %p210
    // Predicated region
    $region38: #{tpu_custom_call.1} parent=1 // pred_check
      _
    $region39: #{tpu_custom_call.1} parent=1 // pred_check_branch
      %213 = sbr.rel (%p210) target = $region41
    $region40: #{tpu_custom_call.1} parent=1 // pred_region
      %vm214 = vcmp.eq.s32.totalorder %v174, 1
      %vm215 = vcmp.eq.s32.totalorder %v175, 1
      %v216 = vsel %vm214, 1, 0
      %v217 = vsel %vm215, 1, 0
      %218 = vset.pattern.permute.xlu0 0
      %219 = vperm.xlu0 %218, %v216
      %v220 = vpop.permute.xlu0 %219
      %221 = vset.pattern.permute.xlu0 0
      %222 = vperm.xlu0 %221, %v217
      %v223 = vpop.permute.xlu0 %222
      %vm224 = vcmp.eq.s32.totalorder %v220, 1
      %vm225 = vcmp.eq.s32.totalorder %v223, 1
      %v226 = vsel %vm224, %v172, 0.0
      %v227 = vsel %vm225, %v173, 0.0
      %v228 = vmax.f32 %v226, %v227
      %v229 = vrot.slane %v228, 4
      %v230 = vmax.f32 %v228, %v229
      %v231 = vrot.slane %v230, 2
      %v232 = vmax.f32 %v230, %v231
      %v233 = vrot.slane %v232, 1
      %v234 = vmax.f32 %v232, %v233
      %v235 = vld [vmem:[#allocation8 + $0x1] sm:$0x1]
      %v236 = vmax.f32 %v235, %v234
      %237 = vst [vmem:[#allocation8 + $0x1] sm:$0x1] %v236
    $region41: #{tpu_custom_call.1} parent=1 // pred_fallthru
      _
    // Predicated region
    $region42: #{tpu_custom_call.1} parent=1 // pred_check
      _
    $region43: #{tpu_custom_call.1} parent=1 // pred_check_branch
      %239 = sbr.rel (0) target = $region45
    $region44: #{tpu_custom_call.1} parent=1 // pred_region
      %241 = vsyncadd [#allocation7], 0
      %s243 = sshll.u32 [#allocation8], 4
      %s244 = int_to_ptr.vmem [resolvable:$true] %s243
      %s245 = sshll.u32 %s8, 4
      %s246 = int_to_ptr.hbm [resolvable:$true] %s245
      %248 = dma.vmem_to_hbm [thread:$0]  %s244, 128, %s246, [#allocation7]
    $region45: #{tpu_custom_call.1} parent=1 // pred_fallthru
      _
    // Predicated region
    $region46: #{tpu_custom_call.1} parent=1 // pred_check
      _
    $region47: #{tpu_custom_call.1} parent=1 // pred_check_branch
      %250 = sbr.rel (0) target = $region49
    $region48: #{tpu_custom_call.1} parent=1 // pred_region
      %252 = dma.done [#allocation7], 128
    $region49: #{tpu_custom_call.1} parent=1 // pred_fallthru
      _
    %253 = vsyncpa [#allocation6], 1
    %254 = vsyncpa [#allocation7], 1

</llo_original>
